<compile_context>
chip_gen: v7x
topology: tpu7x:2x2x1
jax: 0.10.0
libtpu: 0.0.40
codegen_flags: <defaults>
</compile_context>

<pallas_src>
import functools

import jax
import jax.numpy as jnp
from jax.experimental import pallas as pl
from jax.experimental.pallas import tpu as pltpu


def _ce_kernel(x_ref, y_ref, o_ref, *, block_rows, resident_y):
    # x_ref: (TN, C) in the input dtype, o_ref: (TN, 1) f32
    # y_ref: (N_pad, 1) int32 (resident) or (TN, 1) int32 (per-tile)
    x = x_ref[...].astype(jnp.float32)              # in-register cast (VPU slack)

    if resident_y:
        start = pl.program_id(0) * block_rows
        if block_rows % 8 == 0:
            start = pl.multiple_of(start, 8)
        y = y_ref[pl.ds(start, block_rows), :]      # (TN, 1)
    else:
        y = y_ref[...]                              # (TN, 1)

    # Numerically stable logsumexp over the class (lane) axis, reusing xm for
    # the target gather:  lse - x[y] = log(sum(exp(x - m))) - (x[y] - m).
    m = jnp.max(x, axis=-1, keepdims=True)          # (TN, 1)
    xm = x - m                                      # (TN, C)
    s = jnp.sum(jnp.exp(xm), axis=-1, keepdims=True)

    col = jax.lax.broadcasted_iota(jnp.int32, (1, x.shape[-1]), 1)   # (1, C)
    tgt_m = jnp.sum(jnp.where(col == y, xm, 0.0), axis=-1, keepdims=True)

    o_ref[...] = jnp.log(s) - tgt_m                 # (TN, 1)


def _vmem_limit_bytes():
    """Generation-aware VMEM limit: ~3/4 of physical, capped at 96 MiB."""
    cap = None
    try:
        cap = getattr(pltpu.get_tpu_info(), "vmem_capacity_bytes", None)
    except Exception:
        cap = None
    if not cap:
        cap = 64 * 1024 * 1024                      # conservative: v7x per-TC VMEM
    return int(min(cap * 3 // 4, 96 * 1024 * 1024))


def _choose_block_rows(n_rows, n_cols, itemsize, vmem_limit):
    """Pick TN so 2x input buffers + f32 temps + small blocks fit ~half of VMEM."""
    sub = max(8, 32 // itemsize)                    # sublane multiple: f32->8, bf16->16
    lanes = ((n_cols + 127) // 128) * 128           # lane-padded class axis in VMEM
    # Per-row VMEM bytes:
    #   2x double-buffered input tile            : 2 * lanes * itemsize
    #   ~4 full-width f32 temps (x, x-m, exp, where): 4 * lanes * 4
    #   lane-padded (.,1) label + output blocks (x2 buffers each): 2*(2*128*4)
    per_row = 2 * lanes * itemsize + 4 * lanes * 4 + 2 * (2 * 128 * 4)
    budget = vmem_limit // 2                        # ~50% headroom for compiler scratch
    tn = budget // per_row
    # soft cap: <= ~8 MiB per input buffer (HBM streaming saturates well before)
    tn = min(tn, (8 * 1024 * 1024) // (lanes * itemsize))
    tn = max(sub, tn - (tn % sub))
    n_up = ((n_rows + sub - 1) // sub) * sub        # never (much) bigger than the batch
    return max(sub, min(tn, n_up))


def cross_entropy_none(x, y, *, block_rows=None, resident_y=None):
    """Per-sample cross-entropy (reduction='none'), matching torch semantics."""
    N, C = x.shape
    itemsize = jnp.dtype(x.dtype).itemsize
    vmem_limit = _vmem_limit_bytes()
    tn = block_rows if block_rows is not None else _choose_block_rows(
        N, C, itemsize, vmem_limit)
    grid = pl.cdiv(N, tn)
    n_pad = grid * tn

    y2 = y.astype(jnp.int32).reshape(N, 1)
    if resident_y is None:
        # Resident labels only while their lane-padded VMEM footprint stays tiny.
        resident_y = (n_pad * 128 * 4) <= (2 * 1024 * 1024)

    if resident_y:
        # DMA'd once (block index never changes), sliced per step in the kernel.
        y2 = jnp.pad(y2, ((0, n_pad - N), (0, 0)))
        y_spec = pl.BlockSpec((n_pad, 1), lambda i: (0, 0))
    else:
        y_spec = pl.BlockSpec((tn, 1), lambda i: (i, 0))

    kernel = functools.partial(_ce_kernel, block_rows=tn, resident_y=resident_y)

    out = pl.pallas_call(
        kernel,
        out_shape=jax.ShapeDtypeStruct((N, 1), jnp.float32),
        grid=(grid,),                               # pipelined row tiles; ragged tail OK
        in_specs=[
            pl.BlockSpec((tn, C), lambda i: (i, 0)),  # x streamed in native dtype
            y_spec,
        ],
        out_specs=pl.BlockSpec((tn, 1), lambda i: (i, 0)),
        compiler_params=pltpu.CompilerParams(
            dimension_semantics=("parallel",),
            vmem_limit_bytes=vmem_limit,
        ),
    )(x, y2)
    return out[:, 0]


if __name__ == "__main__":
    key = jax.random.PRNGKey(0)
    kx, ky = jax.random.split(key)

    # small shapes consistent with the module: batch=8 samples, 32 classes
    N, C = 8, 32
    x = jax.random.normal(kx, (N, C), dtype=jnp.float32)
    y = jax.random.randint(ky, (N,), 0, C, dtype=jnp.int32)

    loss = jax.block_until_ready(cross_entropy_none(x, y))
    ref = jax.nn.logsumexp(x, axis=-1) - x[jnp.arange(N), y]
    assert loss.shape == (N,)
    assert jnp.allclose(loss, ref, atol=1e-5, rtol=1e-5)

    # multi-tile + ragged-grid check (resident-y path, sliced per step)
    kb = jax.random.split(ky, 2)
    N2, C2 = 200, 96
    xb = jax.random.normal(kb[0], (N2, C2), dtype=jnp.float32)
    yb = jax.random.randint(kb[1], (N2,), 0, C2, dtype=jnp.int32)
    ref2 = jax.nn.logsumexp(xb, axis=-1) - xb[jnp.arange(N2), yb]
    loss2 = jax.block_until_ready(cross_entropy_none(xb, yb, block_rows=64))
    assert jnp.allclose(loss2, ref2, atol=1e-5, rtol=1e-5)

    # per-tile-label path (large-N fallback) on the same data
    loss2b = jax.block_until_ready(
        cross_entropy_none(xb, yb, block_rows=64, resident_y=False))
    assert jnp.allclose(loss2b, ref2, atol=1e-5, rtol=1e-5)

    # bf16-logit check: no wrapper upcast, kernel casts in-register
    xb16 = xb.astype(jnp.bfloat16)
    loss3 = jax.block_until_ready(cross_entropy_none(xb16, yb))
    x32 = xb16.astype(jnp.float32)
    ref3 = jax.nn.logsumexp(x32, axis=-1) - x32[jnp.arange(N2), yb]
    assert jnp.allclose(loss3, ref3, atol=1e-5, rtol=1e-5)

    print("KERNEL_OK")
</pallas_src>

<mosaic_0001>
module attributes {stable_mosaic.version = 11 : i64} {
  func.func @_ce_kernel(%arg0: i32, %arg1: memref<8x32xf32, #tpu.memory_space<vmem>>, %arg2: memref<8x1xi32, #tpu.memory_space<vmem>>, %arg3: memref<8x1xf32, #tpu.memory_space<vmem>>) attributes {dimension_semantics = [#tpu.dimension_semantics<parallel>], iteration_bounds = array<i64: 1>, scalar_prefetch = 0 : i64, scratch_operands = 0 : i64, tpu.core_type = #tpu.core_type<tc>, window_params = [{transform_indices = @transform_0, window_bounds = array<i64: 8, 32>}, {pipeline_mode = #tpu.pipeline_mode<synchronous>, transform_indices = @transform_1, window_bounds = array<i64: 8, 1>}, {transform_indices = @transform_2, window_bounds = array<i64: 8, 1>}]} {
    %c0 = arith.constant 0 : index
    %c0_0 = arith.constant 0 : index
    %0 = vector.load %arg1[%c0, %c0_0] : memref<8x32xf32, #tpu.memory_space<vmem>>, vector<8x32xf32>
    %c8_i32 = arith.constant 8 : i32
    %1 = arith.muli %arg0, %c8_i32 : i32
    %2 = tpu.assume_multiple %1, 8 : i32
    %3 = arith.index_cast %2 : i32 to index
    %c0_1 = arith.constant 0 : index
    %4 = vector.load %arg2[%3, %c0_1] : memref<8x1xi32, #tpu.memory_space<vmem>>, vector<8x1xi32>
    %cst = arith.constant dense<0xFF800000> : vector<8xf32>
    %5 = vector.multi_reduction <maximumf>, %0, %cst [1] : vector<8x32xf32> to vector<8xf32>
    %6 = vector.shape_cast %5 : vector<8xf32> to vector<8x1xf32>
    %7 = vector.broadcast %6 : vector<8x1xf32> to vector<8x32xf32>
    %8 = arith.subf %0, %7 : vector<8x32xf32>
    %9 = math.exp %8 : vector<8x32xf32>
    %cst_2 = arith.constant dense<0.000000e+00> : vector<8xf32>
    %10 = vector.multi_reduction <add>, %9, %cst_2 [1] : vector<8x32xf32> to vector<8xf32>
    %11 = vector.shape_cast %10 : vector<8xf32> to vector<8x1xf32>
    %12 = tpu.iota {dimensions = array<i32: 1>} : vector<1x32xi32>
    %13 = vector.broadcast %12 : vector<1x32xi32> to vector<8x32xi32>
    %14 = vector.broadcast %4 : vector<8x1xi32> to vector<8x32xi32>
    %15 = arith.cmpi eq, %13, %14 : vector<8x32xi32>
    %cst_3 = arith.constant 0.000000e+00 : f32
    %16 = vector.broadcast %cst_3 : f32 to vector<8x32xf32>
    %17 = arith.select %15, %8, %16 : vector<8x32xi1>, vector<8x32xf32>
    %cst_4 = arith.constant dense<0.000000e+00> : vector<8xf32>
    %18 = vector.multi_reduction <add>, %17, %cst_4 [1] : vector<8x32xf32> to vector<8xf32>
    %19 = vector.shape_cast %18 : vector<8xf32> to vector<8x1xf32>
    %20 = math.log %11 : vector<8x1xf32>
    %21 = arith.subf %20, %19 : vector<8x1xf32>
    %c0_5 = arith.constant 0 : index
    %c0_6 = arith.constant 0 : index
    %22 = vector.load %arg3[%c0_5, %c0_6] : memref<8x1xf32, #tpu.memory_space<vmem>>, vector<8x1xf32>
    tpu.vector_store %arg3[%c0_5, %c0_6], %21 {strides = array<i32>} : memref<8x1xf32, #tpu.memory_space<vmem>>, vector<8x1xf32>,
    return
  }
  func.func @transform_0(%arg0: i32) -> (i32, i32) {
    %c0_i32 = arith.constant 0 : i32
    %c0_i32_0 = arith.constant 0 : i32
    return %arg0, %c0_i32 : i32, i32
  }
  func.func @transform_1(%arg0: i32) -> (i32, i32) {
    %c0_i32 = arith.constant 0 : i32
    %c0_i32_0 = arith.constant 0 : i32
    %c0_i32_1 = arith.constant 0 : i32
    return %c0_i32, %c0_i32_0 : i32, i32
  }
  func.func @transform_2(%arg0: i32) -> (i32, i32) {
    %c0_i32 = arith.constant 0 : i32
    %c0_i32_0 = arith.constant 0 : i32
    return %arg0, %c0_i32 : i32, i32
  }
}

</mosaic_0001>

<llo_original>
// kernel: tpu_custom_call.1
$region0: #{tpu_custom_call.1}
  #allocation0 [shape = 'u32[]', space=smem, size = 0x4, offset = 0x4, fixed_abs, tag = 'smem constant byte address 0x4 - core index']
  #allocation1 [shape = 'u32[144,128]{1,0:T(1,128)}', space=vmem, size = 0x12000, scoped, tag = 'internal scratch']
  %s0 = inlined_call_operand.vmem [shape: f32[8,32], index: 0, kind: input, shape index: {}]
  %s1 = inlined_call_operand.vmem [shape: s32[8,1], index: 1, kind: input, shape index: {}]
  %s2 = inlined_call_operand.vmem [shape: f32[8,1], index: 2, kind: output, shape index: {}]
  %s3 = sld [smem:[#allocation0]]
  $region18: #{tpu_custom_call.1} parent=0
    _
  %s5 = ssub.s32 1, %s3
  %s6 = scalar_select 0, %s5, %s3
  // Predicated region
  $region2: #{tpu_custom_call.1} parent=0 // pred_check
    _
  $region3: #{tpu_custom_call.1} parent=0 // pred_check_branch
    %8 = sbr.rel (0) target = $region5
  $region4: #{tpu_custom_call.1} parent=0 // pred_region
    _
  $region5: #{tpu_custom_call.1} parent=0 // pred_fallthru
    _
  // Predicated region
  $region6: #{tpu_custom_call.1} parent=0 // pred_check
    _
  $region7: #{tpu_custom_call.1} parent=0 // pred_check_branch
    %10 = sbr.rel (0) target = $region9
  $region8: #{tpu_custom_call.1} parent=0 // pred_region
    _
  $region9: #{tpu_custom_call.1} parent=0 // pred_fallthru
    _
  %v11 = vld [vmem:[%s0] sm:$0xff]
  %s12 = smul.u32 0, 8
  %s13 = scalar_lea.vmem %s1, %s12
  %v14 = vld [vmem:[%s13] sm:$0xff]
  %vm15 = vcmask 261120
  %v16 = vsel %vm15, %v11, -inf
  %17 = vmax.xlane.f32.xlu0 %v16
  %v18 = vpop.xlane.xlu0 %17
  %v19 = vsub.f32 %v11, %v18
  %v20 = vmul.f32 %v19, 1.442695
  %v21 = vpow.pop %v20
  %v22 = vsel %vm15, %v21, 0.0
  %23 = vadd.xlane.f32.xlu0 %v22
  %v24 = vpop.xlane.xlu0 %23
  %v25 = vlaneseq
  %v26 = vand.u32 %v25, 127
  %27 = vset.pattern.permute.xlu0 0
  %28 = vperm.xlu0 %27, %v14
  %v29 = vpop.permute.xlu0 %28
  %vm30 = vcmp.eq.s32.totalorder %v26, %v29
  %v31 = vsel %vm30, %v19, 0.0
  %v32 = vsel %vm15, %v31, 0.0
  %33 = vadd.xlane.f32.xlu0 %v32
  %v34 = vpop.xlane.xlu0 %33
  %v35 = vlog2.pop %v24
  %v36 = vmul.f32 %v35, 0.6931472
  %v37 = vsub.f32 %v36, %v34
  %vm38 = vcmask 7168
  %39 = vst.msk [vmem:[%s2] sm:$0xff] %vm38, %v37
  // Predicated region
  $region10: #{tpu_custom_call.1} parent=0 // pred_check
    _
  $region11: #{tpu_custom_call.1} parent=0 // pred_check_branch
    %41 = sbr.rel (0) target = $region13
  $region12: #{tpu_custom_call.1} parent=0 // pred_region
    _
  $region13: #{tpu_custom_call.1} parent=0 // pred_fallthru
    _
  // Predicated region
  $region14: #{tpu_custom_call.1} parent=0 // pred_check
    _
  $region15: #{tpu_custom_call.1} parent=0 // pred_check_branch
    %43 = sbr.rel (0) target = $region17
  $region16: #{tpu_custom_call.1} parent=0 // pred_region
    _
  $region17: #{tpu_custom_call.1} parent=0 // pred_fallthru
    _

</llo_original>
